<compile_context>
chip_gen: v5e
topology: v5e:2x2
jax: 0.10.0
libtpu: 0.0.40
codegen_flags: <defaults>
</compile_context>

<pallas_src>
import jax
import jax.numpy as jnp
from jax.experimental import pallas as pl
from jax.experimental.pallas import tpu as pltpu

N_JOINTS_FLAGS = 55


def _round_up(x, m):
    return ((x + m - 1) // m) * m


# ----------------------------------------------------------------------------
# Pallas kernel: one grid step per batch TILE (TB rows at a time).
# All big tensors are coordinate-major slabs: columns = [x-block | y-block | z-block].
# ----------------------------------------------------------------------------
def _make_body_kernel(nb, jpad, vpad):
    def kernel(params_ref,   # [TB, NB+12]  packed: betas | trans(3) | R(3x3 row-major)
               sd2d_ref,     # [NB, 3*Vpad] shape blendshapes slab          (shared)
               vt_ref,       # [1,  3*Vpad] v_template slab                 (shared)
               sj_ref,       # [NB, 3*Jpad] hoisted shapedirs @ J_reg^T     (shared)
               jt_ref,       # [1,  3*Jpad] hoisted v_template @ J_reg^T    (shared)
               kpts_ref,     # out [TB, 3*Jpad]
               verts_ref):   # out [TB, 3*Vpad]
        betas = params_ref[:, :nb]                                        # [TB, NB]

        # --- two MXU matmuls with M = TB (batch tile) ---------------------
        v_shaped = vt_ref[...] + jnp.dot(betas, sd2d_ref[...],
                                         preferred_element_type=jnp.float32)  # [TB, 3Vpad]
        j_rest = jt_ref[...] + jnp.dot(betas, sj_ref[...],
                                       preferred_element_type=jnp.float32)    # [TB, 3Jpad]

        # --- per-batch small params, broadcast over lanes ------------------
        tx = params_ref[:, nb + 0:nb + 1]
        ty = params_ref[:, nb + 1:nb + 2]
        tz = params_ref[:, nb + 2:nb + 3]
        r = [params_ref[:, nb + 3 + i:nb + 4 + i] for i in range(9)]      # row-major R

        # --- pelvis (joint 0) per coordinate -------------------------------
        jx = j_rest[:, 0 * jpad:1 * jpad]
        jy = j_rest[:, 1 * jpad:2 * jpad]
        jz = j_rest[:, 2 * jpad:3 * jpad]
        px = jx[:, 0:1]
        py = jy[:, 0:1]
        pz = jz[:, 0:1]

        # --- global pose for joints: R @ (j - pelvis) + pelvis + t  (VPU) --
        dx, dy, dz = jx - px, jy - py, jz - pz
        kpts_ref[:, 0 * jpad:1 * jpad] = r[0] * dx + r[1] * dy + r[2] * dz + px + tx
        kpts_ref[:, 1 * jpad:2 * jpad] = r[3] * dx + r[4] * dy + r[5] * dz + py + ty
        kpts_ref[:, 2 * jpad:3 * jpad] = r[6] * dx + r[7] * dy + r[8] * dz + pz + tz

        # --- global pose for verts (same pelvis) ---------------------------
        vx = v_shaped[:, 0 * vpad:1 * vpad]
        vy = v_shaped[:, 1 * vpad:2 * vpad]
        vz = v_shaped[:, 2 * vpad:3 * vpad]
        ex, ey, ez = vx - px, vy - py, vz - pz
        verts_ref[:, 0 * vpad:1 * vpad] = r[0] * ex + r[1] * ey + r[2] * ez + px + tx
        verts_ref[:, 1 * vpad:2 * vpad] = r[3] * ex + r[4] * ey + r[5] * ez + py + ty
        verts_ref[:, 2 * vpad:3 * vpad] = r[6] * ex + r[7] * ey + r[8] * ez + pz + tz

    return kernel


# ----------------------------------------------------------------------------
# JAX glue
# ----------------------------------------------------------------------------
def rodrigues(aa):
    """Axis-angle [B, 3] -> rotation matrices [B, 3, 3] (parameter/glue math)."""
    angle = jnp.sqrt(jnp.sum(aa * aa, axis=-1, keepdims=True) + 1e-12)   # [B, 1]
    axis = aa / angle
    x, y, z = axis[:, 0], axis[:, 1], axis[:, 2]
    zeros = jnp.zeros_like(x)
    K = jnp.stack([zeros, -z, y,
                   z, zeros, -x,
                   -y, x, zeros], axis=-1).reshape(-1, 3, 3)             # [B, 3, 3]
    c = jnp.cos(angle)[:, :, None]
    s = jnp.sin(angle)[:, :, None]
    outer = axis[:, :, None] * axis[:, None, :]
    return jnp.eye(3, dtype=aa.dtype)[None] * c + s * K + (1.0 - c) * outer


def precompute_body_weights(shapedirs, v_template, j_regressor):
    """One-time algebraic hoist + slab layout (done at model init, not per call)."""
    three, nb, v = shapedirs.shape
    assert three == 3
    j = j_regressor.shape[0]
    vpad = _round_up(v, 128)
    jpad = _round_up(j, 128)

    # coordinate-major slabs, V padded to a lane multiple
    sd = jnp.pad(shapedirs, ((0, 0), (0, 0), (0, vpad - v)))             # [3, NB, Vpad]
    vt = jnp.pad(v_template, ((0, 0), (0, vpad - v)))                    # [3, Vpad]
    sd2d = jnp.transpose(sd, (1, 0, 2)).reshape(nb, 3 * vpad)            # [NB, 3Vpad]
    vt2d = vt.reshape(1, 3 * vpad)

    # hoisted joint-regression products (kills the per-batch [3,V]@[V,J] dot)
    sj = jnp.einsum('knv,jv->knj', shapedirs, j_regressor)               # [3, NB, J]
    sj = jnp.pad(sj, ((0, 0), (0, 0), (0, jpad - j)))
    sj2d = jnp.transpose(sj, (1, 0, 2)).reshape(nb, 3 * jpad)            # [NB, 3Jpad]
    jt = jnp.einsum('kv,jv->kj', v_template, j_regressor)                # [3, J]
    jt2d = jnp.pad(jt, ((0, 0), (0, jpad - j))).reshape(1, 3 * jpad)

    return dict(sd2d=sd2d, vt2d=vt2d, sj2d=sj2d, jt2d=jt2d,
                nb=nb, v=v, j=j, vpad=vpad, jpad=jpad)


def body_model_forward(betas, trans, root_orient, weights, *, batch_tile=128):
    """Runs the Pallas kernel. Returns (Jtr [B, J, 3], v [B, V, 3])."""
    B, nb = betas.shape
    assert nb == weights['nb']
    vpad, jpad = weights['vpad'], weights['jpad']
    V, J = weights['v'], weights['j']

    tb = min(batch_tile, _round_up(B, 8))      # batch tile (sublane-aligned)
    b_pad = _round_up(B, tb)

    # pack per-batch small params into ONE array -> one DMA per grid step
    rootR = rodrigues(root_orient).reshape(B, 9)
    params = jnp.concatenate([betas, trans, rootR], axis=-1)             # [B, NB+12]
    params = jnp.pad(params, ((0, b_pad - B), (0, 0)))                   # [B_pad, NB+12]

    # VMEM budget: (double-buffered) inputs + outputs + headroom, capped at 64 MiB.
    f32 = 4
    est = 2 * f32 * (tb * (nb + 12) + nb * 3 * vpad + 3 * vpad
                     + nb * 3 * jpad + 3 * jpad
                     + tb * 3 * jpad + tb * 3 * vpad)
    vmem_limit = int(min(max(est + (4 << 20), 32 << 20), 64 << 20))

    kernel = _make_body_kernel(nb, jpad, vpad)
    kpts, verts = pl.pallas_call(
        kernel,
        out_shape=(jax.ShapeDtypeStruct((b_pad, 3 * jpad), jnp.float32),
                   jax.ShapeDtypeStruct((b_pad, 3 * vpad), jnp.float32)),
        grid_spec=pltpu.PrefetchScalarGridSpec(
            num_scalar_prefetch=0,
            grid=(b_pad // tb,),
            in_specs=[
                pl.BlockSpec((tb, nb + 12), lambda g: (g, 0)),     # packed per-batch params
                pl.BlockSpec((nb, 3 * vpad), lambda g: (0, 0)),    # shapedirs slab (shared)
                pl.BlockSpec((1, 3 * vpad), lambda g: (0, 0)),     # v_template slab (shared)
                pl.BlockSpec((nb, 3 * jpad), lambda g: (0, 0)),    # hoisted S_J (shared)
                pl.BlockSpec((1, 3 * jpad), lambda g: (0, 0)),     # hoisted J_template (shared)
            ],
            out_specs=[
                pl.BlockSpec((tb, 3 * jpad), lambda g: (g, 0)),
                pl.BlockSpec((tb, 3 * vpad), lambda g: (g, 0)),
            ],
        ),
        compiler_params=pltpu.CompilerParams(
            dimension_semantics=("parallel",),
            vmem_limit_bytes=vmem_limit),
    )(params, weights['sd2d'], weights['vt2d'], weights['sj2d'], weights['jt2d'])

    Jtr = kpts.reshape(b_pad, 3, jpad)[:B, :, :J].transpose(0, 2, 1)     # [B, J, 3]
    v = verts.reshape(b_pad, 3, vpad)[:B, :, :V].transpose(0, 2, 1)      # [B, V, 3]
    return Jtr, v


class SourceKeyPointsPallas:
    """JAX/Pallas analogue of process/moton2smplx.py::SourceKeyPoints."""

    def __init__(self, bm_params, n_joints=N_JOINTS_FLAGS, kpts_colors=None):
        shapedirs, v_template, j_regressor = bm_params
        self.weights = precompute_body_weights(shapedirs, v_template, j_regressor)
        self.n_joints = n_joints
        self.kpts_colors = (jnp.tile(jnp.array([[0.5, 0.5, 0.5]], jnp.float32),
                                     (n_joints, 1))
                            if kpts_colors is None else kpts_colors)

    def __call__(self, body_parms):
        Jtr, v = body_model_forward(body_parms['betas'],
                                    body_parms['trans'],
                                    body_parms['root_orient'],
                                    self.weights)
        new_body = {'Jtr': Jtr, 'v': v}
        return {'source_kpts': Jtr[:, :self.n_joints], 'body': new_body}


# ----------------------------------------------------------------------------
# Pure-JAX reference (sanity check for BOTH joints and verts)
# ----------------------------------------------------------------------------
def reference_forward(betas, trans, root_orient, shapedirs, v_template, j_regressor):
    rootR = rodrigues(root_orient)                                  # [B,3,3]
    delta = jnp.einsum('bl,klv->bkv', betas, shapedirs)             # [B,3,V]
    v_shaped = v_template[None] + delta                             # [B,3,V]
    j_rest = jnp.einsum('bkv,jv->bkj', v_shaped, j_regressor)       # [B,3,J]
    pelvis = j_rest[:, :, 0:1]                                      # [B,3,1]
    j_posed = jnp.einsum('bij,bjn->bin', rootR, j_rest - pelvis) + pelvis \
        + trans[:, :, None]
    v_posed = jnp.einsum('bij,bjn->bin', rootR, v_shaped - pelvis) + pelvis \
        + trans[:, :, None]
    return (jnp.transpose(j_posed, (0, 2, 1)),                      # [B,J,3]
            jnp.transpose(v_posed, (0, 2, 1)))                      # [B,V,3]


if __name__ == "__main__":
    key = jax.random.PRNGKey(0)
    ks = jax.random.split(key, 8)

    B, V, NB, J = 2, 512, 16, N_JOINTS_FLAGS

    # Deterministic synthetic BodyModel parameters (no checkpoint load).
    v_template = 0.2 * jax.random.normal(ks[0], (3, V), jnp.float32)
    shapedirs = 0.01 * jax.random.normal(ks[1], (3, NB, V), jnp.float32)
    j_regressor = jax.random.uniform(ks[2], (J, V), jnp.float32)
    j_regressor = j_regressor / jnp.sum(j_regressor, axis=1, keepdims=True)

    # body_parms (betas / trans / root_orient), as fed to BodyModel(**body_parms).
    body_parms = {
        'betas': jax.random.normal(ks[3], (B, NB), jnp.float32),
        'trans': 0.1 * jax.random.normal(ks[4], (B, 3), jnp.float32),
        'root_orient': 0.3 * jax.random.normal(ks[5], (B, 3), jnp.float32),
    }

    model = SourceKeyPointsPallas((shapedirs, v_template, j_regressor),
                                  n_joints=N_JOINTS_FLAGS)
    out = model(body_parms)
    kpts = jax.block_until_ready(out['source_kpts'])
    verts = jax.block_until_ready(out['body']['v'])

    ref_j, ref_v = reference_forward(body_parms['betas'], body_parms['trans'],
                                     body_parms['root_orient'],
                                     shapedirs, v_template, j_regressor)
    ref_kpts = ref_j[:, :N_JOINTS_FLAGS]

    assert kpts.shape == (B, N_JOINTS_FLAGS, 3), kpts.shape
    assert verts.shape == (B, V, 3), verts.shape
    assert jnp.allclose(kpts, ref_kpts, atol=1e-3, rtol=1e-3)
    assert jnp.allclose(verts, ref_v, atol=1e-3, rtol=1e-3)

    print("KERNEL_OK")
</pallas_src>

<mosaic_0001>
module attributes {stable_mosaic.version = 11 : i64} {
  func.func @kernel(%arg0: i32, %arg1: memref<8x28xf32, #tpu.memory_space<vmem>>, %arg2: memref<16x1536xf32, #tpu.memory_space<vmem>>, %arg3: memref<1x1536xf32, #tpu.memory_space<vmem>>, %arg4: memref<16x384xf32, #tpu.memory_space<vmem>>, %arg5: memref<1x384xf32, #tpu.memory_space<vmem>>, %arg6: memref<8x384xf32, #tpu.memory_space<vmem>>, %arg7: memref<8x1536xf32, #tpu.memory_space<vmem>>) attributes {dimension_semantics = [#tpu.dimension_semantics<parallel>], iteration_bounds = array<i64: 1>, scalar_prefetch = 0 : i64, scratch_operands = 0 : i64, tpu.core_type = #tpu.core_type<tc>, window_params = [{transform_indices = @transform_0, window_bounds = array<i64: 8, 28>}, {pipeline_mode = #tpu.pipeline_mode<synchronous>, transform_indices = @transform_1, window_bounds = array<i64: 16, 1536>}, {pipeline_mode = #tpu.pipeline_mode<synchronous>, transform_indices = @transform_2, window_bounds = array<i64: 1, 1536>}, {pipeline_mode = #tpu.pipeline_mode<synchronous>, transform_indices = @transform_3, window_bounds = array<i64: 16, 384>}, {pipeline_mode = #tpu.pipeline_mode<synchronous>, transform_indices = @transform_4, window_bounds = array<i64: 1, 384>}, {transform_indices = @transform_5, window_bounds = array<i64: 8, 384>}, {transform_indices = @transform_6, window_bounds = array<i64: 8, 1536>}]} {
    %c0 = arith.constant 0 : index
    %c0_0 = arith.constant 0 : index
    %0 = vector.load %arg1[%c0, %c0_0] : memref<8x28xf32, #tpu.memory_space<vmem>>, vector<8x16xf32>
    %c0_1 = arith.constant 0 : index
    %c0_2 = arith.constant 0 : index
    %1 = vector.load %arg3[%c0_1, %c0_2] : memref<1x1536xf32, #tpu.memory_space<vmem>>, vector<1x1536xf32>
    %c0_3 = arith.constant 0 : index
    %c0_4 = arith.constant 0 : index
    %2 = vector.load %arg2[%c0_3, %c0_4] : memref<16x1536xf32, #tpu.memory_space<vmem>>, vector<16x1536xf32>
    %cst = arith.constant dense<0.000000e+00> : vector<8x1536xf32>
    %3 = tpu.matmul %0, %2, %cst {dimension_numbers = #tpu.dot_dimension_numbers<[1], [0], [0], [1], [0, 0, 1, 1], [], []>} : vector<8x16xf32>, vector<16x1536xf32>, vector<8x1536xf32> -> vector<8x1536xf32>
    %4 = vector.broadcast %1 : vector<1x1536xf32> to vector<8x1536xf32>
    %5 = arith.addf %4, %3 : vector<8x1536xf32>
    %c0_5 = arith.constant 0 : index
    %c0_6 = arith.constant 0 : index
    %6 = vector.load %arg5[%c0_5, %c0_6] : memref<1x384xf32, #tpu.memory_space<vmem>>, vector<1x384xf32>
    %c0_7 = arith.constant 0 : index
    %c0_8 = arith.constant 0 : index
    %7 = vector.load %arg4[%c0_7, %c0_8] : memref<16x384xf32, #tpu.memory_space<vmem>>, vector<16x384xf32>
    %cst_9 = arith.constant dense<0.000000e+00> : vector<8x384xf32>
    %8 = tpu.matmul %0, %7, %cst_9 {dimension_numbers = #tpu.dot_dimension_numbers<[1], [0], [0], [1], [0, 0, 1, 1], [], []>} : vector<8x16xf32>, vector<16x384xf32>, vector<8x384xf32> -> vector<8x384xf32>
    %9 = vector.broadcast %6 : vector<1x384xf32> to vector<8x384xf32>
    %10 = arith.addf %9, %8 : vector<8x384xf32>
    %c0_10 = arith.constant 0 : index
    %c16 = arith.constant 16 : index
    %11 = vector.load %arg1[%c0_10, %c16] : memref<8x28xf32, #tpu.memory_space<vmem>>, vector<8x1xf32>
    %c0_11 = arith.constant 0 : index
    %c17 = arith.constant 17 : index
    %12 = vector.load %arg1[%c0_11, %c17] : memref<8x28xf32, #tpu.memory_space<vmem>>, vector<8x1xf32>
    %c0_12 = arith.constant 0 : index
    %c18 = arith.constant 18 : index
    %13 = vector.load %arg1[%c0_12, %c18] : memref<8x28xf32, #tpu.memory_space<vmem>>, vector<8x1xf32>
    %c0_13 = arith.constant 0 : index
    %c19 = arith.constant 19 : index
    %14 = vector.load %arg1[%c0_13, %c19] : memref<8x28xf32, #tpu.memory_space<vmem>>, vector<8x1xf32>
    %c0_14 = arith.constant 0 : index
    %c20 = arith.constant 20 : index
    %15 = vector.load %arg1[%c0_14, %c20] : memref<8x28xf32, #tpu.memory_space<vmem>>, vector<8x1xf32>
    %c0_15 = arith.constant 0 : index
    %c21 = arith.constant 21 : index
    %16 = vector.load %arg1[%c0_15, %c21] : memref<8x28xf32, #tpu.memory_space<vmem>>, vector<8x1xf32>
    %c0_16 = arith.constant 0 : index
    %c22 = arith.constant 22 : index
    %17 = vector.load %arg1[%c0_16, %c22] : memref<8x28xf32, #tpu.memory_space<vmem>>, vector<8x1xf32>
    %c0_17 = arith.constant 0 : index
    %c23 = arith.constant 23 : index
    %18 = vector.load %arg1[%c0_17, %c23] : memref<8x28xf32, #tpu.memory_space<vmem>>, vector<8x1xf32>
    %c0_18 = arith.constant 0 : index
    %c24 = arith.constant 24 : index
    %19 = vector.load %arg1[%c0_18, %c24] : memref<8x28xf32, #tpu.memory_space<vmem>>, vector<8x1xf32>
    %c0_19 = arith.constant 0 : index
    %c25 = arith.constant 25 : index
    %20 = vector.load %arg1[%c0_19, %c25] : memref<8x28xf32, #tpu.memory_space<vmem>>, vector<8x1xf32>
    %c0_20 = arith.constant 0 : index
    %c26 = arith.constant 26 : index
    %21 = vector.load %arg1[%c0_20, %c26] : memref<8x28xf32, #tpu.memory_space<vmem>>, vector<8x1xf32>
    %c0_21 = arith.constant 0 : index
    %c27 = arith.constant 27 : index
    %22 = vector.load %arg1[%c0_21, %c27] : memref<8x28xf32, #tpu.memory_space<vmem>>, vector<8x1xf32>
    %23 = vector.extract_strided_slice %10 {offsets = [0, 0], sizes = [8, 128], strides = [1, 1]} : vector<8x384xf32> to vector<8x128xf32>
    %24 = vector.extract_strided_slice %10 {offsets = [0, 128], sizes = [8, 128], strides = [1, 1]} : vector<8x384xf32> to vector<8x128xf32>
    %25 = vector.extract_strided_slice %10 {offsets = [0, 256], sizes = [8, 128], strides = [1, 1]} : vector<8x384xf32> to vector<8x128xf32>
    %26 = vector.extract_strided_slice %23 {offsets = [0, 0], sizes = [8, 1], strides = [1, 1]} : vector<8x128xf32> to vector<8x1xf32>
    %27 = vector.extract_strided_slice %24 {offsets = [0, 0], sizes = [8, 1], strides = [1, 1]} : vector<8x128xf32> to vector<8x1xf32>
    %28 = vector.extract_strided_slice %25 {offsets = [0, 0], sizes = [8, 1], strides = [1, 1]} : vector<8x128xf32> to vector<8x1xf32>
    %29 = vector.broadcast %26 : vector<8x1xf32> to vector<8x128xf32>
    %30 = arith.subf %23, %29 : vector<8x128xf32>
    %31 = vector.broadcast %27 : vector<8x1xf32> to vector<8x128xf32>
    %32 = arith.subf %24, %31 : vector<8x128xf32>
    %33 = vector.broadcast %28 : vector<8x1xf32> to vector<8x128xf32>
    %34 = arith.subf %25, %33 : vector<8x128xf32>
    %35 = vector.broadcast %14 : vector<8x1xf32> to vector<8x128xf32>
    %36 = arith.mulf %35, %30 : vector<8x128xf32>
    %37 = vector.broadcast %15 : vector<8x1xf32> to vector<8x128xf32>
    %38 = arith.mulf %37, %32 : vector<8x128xf32>
    %39 = arith.addf %36, %38 : vector<8x128xf32>
    %40 = vector.broadcast %16 : vector<8x1xf32> to vector<8x128xf32>
    %41 = arith.mulf %40, %34 : vector<8x128xf32>
    %42 = arith.addf %39, %41 : vector<8x128xf32>
    %43 = vector.broadcast %26 : vector<8x1xf32> to vector<8x128xf32>
    %44 = arith.addf %42, %43 : vector<8x128xf32>
    %45 = vector.broadcast %11 : vector<8x1xf32> to vector<8x128xf32>
    %46 = arith.addf %44, %45 : vector<8x128xf32>
    %c0_22 = arith.constant 0 : index
    %c0_23 = arith.constant 0 : index
    %47 = vector.load %arg6[%c0_22, %c0_23] : memref<8x384xf32, #tpu.memory_space<vmem>>, vector<8x128xf32>
    tpu.vector_store %arg6[%c0_22, %c0_23], %46 {strides = array<i32>} : memref<8x384xf32, #tpu.memory_space<vmem>>, vector<8x128xf32>,
    %48 = vector.broadcast %17 : vector<8x1xf32> to vector<8x128xf32>
    %49 = arith.mulf %48, %30 : vector<8x128xf32>
    %50 = vector.broadcast %18 : vector<8x1xf32> to vector<8x128xf32>
    %51 = arith.mulf %50, %32 : vector<8x128xf32>
    %52 = arith.addf %49, %51 : vector<8x128xf32>
    %53 = vector.broadcast %19 : vector<8x1xf32> to vector<8x128xf32>
    %54 = arith.mulf %53, %34 : vector<8x128xf32>
    %55 = arith.addf %52, %54 : vector<8x128xf32>
    %56 = vector.broadcast %27 : vector<8x1xf32> to vector<8x128xf32>
    %57 = arith.addf %55, %56 : vector<8x128xf32>
    %58 = vector.broadcast %12 : vector<8x1xf32> to vector<8x128xf32>
    %59 = arith.addf %57, %58 : vector<8x128xf32>
    %c0_24 = arith.constant 0 : index
    %c128 = arith.constant 128 : index
    %60 = vector.load %arg6[%c0_24, %c128] : memref<8x384xf32, #tpu.memory_space<vmem>>, vector<8x128xf32>
    tpu.vector_store %arg6[%c0_24, %c128], %59 {strides = array<i32>} : memref<8x384xf32, #tpu.memory_space<vmem>>, vector<8x128xf32>,
    %61 = vector.broadcast %20 : vector<8x1xf32> to vector<8x128xf32>
    %62 = arith.mulf %61, %30 : vector<8x128xf32>
    %63 = vector.broadcast %21 : vector<8x1xf32> to vector<8x128xf32>
    %64 = arith.mulf %63, %32 : vector<8x128xf32>
    %65 = arith.addf %62, %64 : vector<8x128xf32>
    %66 = vector.broadcast %22 : vector<8x1xf32> to vector<8x128xf32>
    %67 = arith.mulf %66, %34 : vector<8x128xf32>
    %68 = arith.addf %65, %67 : vector<8x128xf32>
    %69 = vector.broadcast %28 : vector<8x1xf32> to vector<8x128xf32>
    %70 = arith.addf %68, %69 : vector<8x128xf32>
    %71 = vector.broadcast %13 : vector<8x1xf32> to vector<8x128xf32>
    %72 = arith.addf %70, %71 : vector<8x128xf32>
    %c0_25 = arith.constant 0 : index
    %c256 = arith.constant 256 : index
    %73 = vector.load %arg6[%c0_25, %c256] : memref<8x384xf32, #tpu.memory_space<vmem>>, vector<8x128xf32>
    tpu.vector_store %arg6[%c0_25, %c256], %72 {strides = array<i32>} : memref<8x384xf32, #tpu.memory_space<vmem>>, vector<8x128xf32>,
    %74 = vector.extract_strided_slice %5 {offsets = [0, 0], sizes = [8, 512], strides = [1, 1]} : vector<8x1536xf32> to vector<8x512xf32>
    %75 = vector.extract_strided_slice %5 {offsets = [0, 512], sizes = [8, 512], strides = [1, 1]} : vector<8x1536xf32> to vector<8x512xf32>
    %76 = vector.extract_strided_slice %5 {offsets = [0, 1024], sizes = [8, 512], strides = [1, 1]} : vector<8x1536xf32> to vector<8x512xf32>
    %77 = vector.broadcast %26 : vector<8x1xf32> to vector<8x512xf32>
    %78 = arith.subf %74, %77 : vector<8x512xf32>
    %79 = vector.broadcast %27 : vector<8x1xf32> to vector<8x512xf32>
    %80 = arith.subf %75, %79 : vector<8x512xf32>
    %81 = vector.broadcast %28 : vector<8x1xf32> to vector<8x512xf32>
    %82 = arith.subf %76, %81 : vector<8x512xf32>
    %83 = vector.broadcast %14 : vector<8x1xf32> to vector<8x512xf32>
    %84 = arith.mulf %83, %78 : vector<8x512xf32>
    %85 = vector.broadcast %15 : vector<8x1xf32> to vector<8x512xf32>
    %86 = arith.mulf %85, %80 : vector<8x512xf32>
    %87 = arith.addf %84, %86 : vector<8x512xf32>
    %88 = vector.broadcast %16 : vector<8x1xf32> to vector<8x512xf32>
    %89 = arith.mulf %88, %82 : vector<8x512xf32>
    %90 = arith.addf %87, %89 : vector<8x512xf32>
    %91 = vector.broadcast %26 : vector<8x1xf32> to vector<8x512xf32>
    %92 = arith.addf %90, %91 : vector<8x512xf32>
    %93 = vector.broadcast %11 : vector<8x1xf32> to vector<8x512xf32>
    %94 = arith.addf %92, %93 : vector<8x512xf32>
    %c0_26 = arith.constant 0 : index
    %c0_27 = arith.constant 0 : index
    %95 = vector.load %arg7[%c0_26, %c0_27] : memref<8x1536xf32, #tpu.memory_space<vmem>>, vector<8x512xf32>
    tpu.vector_store %arg7[%c0_26, %c0_27], %94 {strides = array<i32>} : memref<8x1536xf32, #tpu.memory_space<vmem>>, vector<8x512xf32>,
    %96 = vector.broadcast %17 : vector<8x1xf32> to vector<8x512xf32>
    %97 = arith.mulf %96, %78 : vector<8x512xf32>
    %98 = vector.broadcast %18 : vector<8x1xf32> to vector<8x512xf32>
    %99 = arith.mulf %98, %80 : vector<8x512xf32>
    %100 = arith.addf %97, %99 : vector<8x512xf32>
    %101 = vector.broadcast %19 : vector<8x1xf32> to vector<8x512xf32>
    %102 = arith.mulf %101, %82 : vector<8x512xf32>
    %103 = arith.addf %100, %102 : vector<8x512xf32>
    %104 = vector.broadcast %27 : vector<8x1xf32> to vector<8x512xf32>
    %105 = arith.addf %103, %104 : vector<8x512xf32>
    %106 = vector.broadcast %12 : vector<8x1xf32> to vector<8x512xf32>
    %107 = arith.addf %105, %106 : vector<8x512xf32>
    %c0_28 = arith.constant 0 : index
    %c512 = arith.constant 512 : index
    %108 = vector.load %arg7[%c0_28, %c512] : memref<8x1536xf32, #tpu.memory_space<vmem>>, vector<8x512xf32>
    tpu.vector_store %arg7[%c0_28, %c512], %107 {strides = array<i32>} : memref<8x1536xf32, #tpu.memory_space<vmem>>, vector<8x512xf32>,
    %109 = vector.broadcast %20 : vector<8x1xf32> to vector<8x512xf32>
    %110 = arith.mulf %109, %78 : vector<8x512xf32>
    %111 = vector.broadcast %21 : vector<8x1xf32> to vector<8x512xf32>
    %112 = arith.mulf %111, %80 : vector<8x512xf32>
    %113 = arith.addf %110, %112 : vector<8x512xf32>
    %114 = vector.broadcast %22 : vector<8x1xf32> to vector<8x512xf32>
    %115 = arith.mulf %114, %82 : vector<8x512xf32>
    %116 = arith.addf %113, %115 : vector<8x512xf32>
    %117 = vector.broadcast %28 : vector<8x1xf32> to vector<8x512xf32>
    %118 = arith.addf %116, %117 : vector<8x512xf32>
    %119 = vector.broadcast %13 : vector<8x1xf32> to vector<8x512xf32>
    %120 = arith.addf %118, %119 : vector<8x512xf32>
    %c0_29 = arith.constant 0 : index
    %c1024 = arith.constant 1024 : index
    %121 = vector.load %arg7[%c0_29, %c1024] : memref<8x1536xf32, #tpu.memory_space<vmem>>, vector<8x512xf32>
    tpu.vector_store %arg7[%c0_29, %c1024], %120 {strides = array<i32>} : memref<8x1536xf32, #tpu.memory_space<vmem>>, vector<8x512xf32>,
    return
  }
  func.func @transform_0(%arg0: i32) -> (i32, i32) {
    %c0_i32 = arith.constant 0 : i32
    %c0_i32_0 = arith.constant 0 : i32
    return %arg0, %c0_i32 : i32, i32
  }
  func.func @transform_1(%arg0: i32) -> (i32, i32) {
    %c0_i32 = arith.constant 0 : i32
    %c0_i32_0 = arith.constant 0 : i32
    %c0_i32_1 = arith.constant 0 : i32
    return %c0_i32, %c0_i32_0 : i32, i32
  }
  func.func @transform_2(%arg0: i32) -> (i32, i32) {
    %c0_i32 = arith.constant 0 : i32
    %c0_i32_0 = arith.constant 0 : i32
    %c0_i32_1 = arith.constant 0 : i32
    return %c0_i32, %c0_i32_0 : i32, i32
  }
  func.func @transform_3(%arg0: i32) -> (i32, i32) {
    %c0_i32 = arith.constant 0 : i32
    %c0_i32_0 = arith.constant 0 : i32
    %c0_i32_1 = arith.constant 0 : i32
    return %c0_i32, %c0_i32_0 : i32, i32
  }
  func.func @transform_4(%arg0: i32) -> (i32, i32) {
    %c0_i32 = arith.constant 0 : i32
    %c0_i32_0 = arith.constant 0 : i32
    %c0_i32_1 = arith.constant 0 : i32
    return %c0_i32, %c0_i32_0 : i32, i32
  }
  func.func @transform_5(%arg0: i32) -> (i32, i32) {
    %c0_i32 = arith.constant 0 : i32
    %c0_i32_0 = arith.constant 0 : i32
    return %arg0, %c0_i32 : i32, i32
  }
  func.func @transform_6(%arg0: i32) -> (i32, i32) {
    %c0_i32 = arith.constant 0 : i32
    %c0_i32_0 = arith.constant 0 : i32
    return %arg0, %c0_i32 : i32, i32
  }
}

</mosaic_0001>

<llo_original>
// kernel: tpu_custom_call.1
$region0: #{tpu_custom_call.1}
  #allocation0 [shape = 'u32[]', space=smem, size = 0x4, offset = 0x4, fixed_abs, tag = 'smem constant byte address 0x4 - core index']
  #allocation1 [shape = 'u32[72,128]{1,0:T(1,128)}', space=vmem, size = 0x9000, scoped, tag = 'internal scratch']
  %s0 = inlined_call_operand.hbm [shape: f32[8,28], index: 0, kind: input, shape index: {}]
  %s1 = inlined_call_operand.hbm [shape: f32[16,1536], index: 1, kind: input, shape index: {}]
  %s2 = inlined_call_operand.hbm [shape: f32[1,1536], index: 2, kind: input, shape index: {}]
  %s3 = inlined_call_operand.hbm [shape: f32[16,384], index: 3, kind: input, shape index: {}]
  %s4 = inlined_call_operand.vmem [shape: f32[1,384], index: 4, kind: input, shape index: {}]
  %s5 = inlined_call_operand.hbm [shape: f32[8,384], index: 5, kind: output, shape index: {0}]
  %s6 = inlined_call_operand.hbm [shape: f32[8,1536], index: 6, kind: output, shape index: {1}]
  %7 = xla_tuple %s5, %s6
  %s8 = sld [smem:[#allocation0]]
  $region54: #{tpu_custom_call.1} parent=0
    _
  %s10 = ssub.s32 1, %s8
  %s11 = scalar_select 0, %s10, %s8
  $region1: #{tpu_custom_call.1} parent=0
    #allocation2 [shape = 'u8[4096]{0}', space=vmem, size = 0x1000, scoped, tag = 'input window, operand 0, single buffered']
    #allocation3 [shape = 's32[1]{0}', space=sflag, size = 0x4, scoped, tag = 'scoped memory for tpu_custom_call.1']
    #allocation4 [shape = 's32[1]{0}', space=sflag, size = 0x4, scoped, tag = 'scoped memory for tpu_custom_call.1']
    #allocation5 [shape = 'u8[98304]{0}', space=vmem, size = 0x18000, scoped, tag = 'input window, operand 1, single buffered']
    #allocation6 [shape = 's32[1]{0}', space=sflag, size = 0x4, scoped, tag = 'scoped memory for tpu_custom_call.1']
    #allocation7 [shape = 'u8[6144]{0}', space=vmem, size = 0x1800, scoped, tag = 'input window, operand 2, single buffered']
    #allocation8 [shape = 'u8[24576]{0}', space=vmem, size = 0x6000, scoped, tag = 'input window, operand 3, single buffered']
    #allocation9 [shape = 's32[1]{0}', space=sflag, size = 0x4, scoped, tag = 'scoped memory for tpu_custom_call.1']
    #allocation10 [shape = 'u8[12288]{0}', space=vmem, size = 0x3000, scoped, tag = 'output window, operand 0, single buffered']
    #allocation11 [shape = 'u8[49152]{0}', space=vmem, size = 0xc000, scoped, tag = 'output window, operand 1, single buffered']
    #allocation12 [shape = 's32[1]{0}', space=sflag, size = 0x4, scoped, tag = 'scoped memory for tpu_custom_call.1']
    %12 = vsyncpa [#allocation3], 0
    %13 = vsyncpa [#allocation6], 0
    %14 = vsyncpa [#allocation9], 0
    %15 = vsyncpa [#allocation4], 0
    %16 = vsyncpa [#allocation12], 0
    // Predicated region
    $region2: #{tpu_custom_call.1} parent=1 // pred_check
      _
    $region3: #{tpu_custom_call.1} parent=1 // pred_check_branch
      %18 = sbr.rel (0) target = $region5
    $region4: #{tpu_custom_call.1} parent=1 // pred_region
      %20 = vsyncadd [#allocation3], 0
      %s22 = sshll.u32 %s0, 4
      %s23 = int_to_ptr.hbm [resolvable:$true] %s22
      %s24 = sshll.u32 [#allocation2], 4
      %s25 = int_to_ptr.vmem [resolvable:$true] %s24
      %27 = dma.hbm_to_vmem [thread:$0]  %s23, 128, %s25, [#allocation3]
    $region5: #{tpu_custom_call.1} parent=1 // pred_fallthru
      _
    // Predicated region
    $region6: #{tpu_custom_call.1} parent=1 // pred_check
      _
    $region7: #{tpu_custom_call.1} parent=1 // pred_check_branch
      %29 = sbr.rel (0) target = $region9
    $region8: #{tpu_custom_call.1} parent=1 // pred_region
      %31 = vsyncadd [#allocation6], 0
      %s32 = sshll.u32 %s1, 4
      %s33 = int_to_ptr.hbm [resolvable:$true] %s32
      %s34 = sshll.u32 [#allocation5], 4
      %s35 = int_to_ptr.vmem [resolvable:$true] %s34
      %40 = dma.hbm_to_vmem [thread:$0]  %s33, 3072, %s35, [#allocation6], 1536, 1536, 96
    $region9: #{tpu_custom_call.1} parent=1 // pred_fallthru
      _
    // Predicated region
    $region10: #{tpu_custom_call.1} parent=1 // pred_check
      _
    $region11: #{tpu_custom_call.1} parent=1 // pred_check_branch
      %42 = sbr.rel (0) target = $region13
    $region12: #{tpu_custom_call.1} parent=1 // pred_region
      %44 = vsyncadd [#allocation6], 0
      %s46 = sshll.u32 %s2, 4
      %s47 = int_to_ptr.hbm [resolvable:$true] %s46
      %s48 = sshll.u32 [#allocation7], 4
      %s49 = int_to_ptr.vmem [resolvable:$true] %s48
      %51 = dma.hbm_to_vmem [thread:$0]  %s47, 192, %s49, [#allocation6]
    $region13: #{tpu_custom_call.1} parent=1 // pred_fallthru
      _
    // Predicated region
    $region14: #{tpu_custom_call.1} parent=1 // pred_check
      _
    $region15: #{tpu_custom_call.1} parent=1 // pred_check_branch
      %53 = sbr.rel (0) target = $region17
    $region16: #{tpu_custom_call.1} parent=1 // pred_region
      %55 = vsyncadd [#allocation9], 0
      %s56 = sshll.u32 %s3, 4
      %s57 = int_to_ptr.hbm [resolvable:$true] %s56
      %s58 = sshll.u32 [#allocation8], 4
      %s59 = int_to_ptr.vmem [resolvable:$true] %s58
      %64 = dma.hbm_to_vmem [thread:$0]  %s57, 768, %s59, [#allocation9], 384, 384, 24
    $region17: #{tpu_custom_call.1} parent=1 // pred_fallthru
      _
    // Predicated region
    $region18: #{tpu_custom_call.1} parent=1 // pred_check
      _
    $region19: #{tpu_custom_call.1} parent=1 // pred_check_branch
      %66 = sbr.rel (0) target = $region21
    $region20: #{tpu_custom_call.1} parent=1 // pred_region
      _
    $region21: #{tpu_custom_call.1} parent=1 // pred_fallthru
      _
    // Predicated region
    $region22: #{tpu_custom_call.1} parent=1 // pred_check
      _
    $region23: #{tpu_custom_call.1} parent=1 // pred_check_branch
      %68 = sbr.rel (0) target = $region25
    $region24: #{tpu_custom_call.1} parent=1 // pred_region
      %70 = dma.done [#allocation3], 128
    $region25: #{tpu_custom_call.1} parent=1 // pred_fallthru
      _
    // Predicated region
    $region26: #{tpu_custom_call.1} parent=1 // pred_check
      _
    $region27: #{tpu_custom_call.1} parent=1 // pred_check_branch
      %72 = sbr.rel (0) target = $region29
    $region28: #{tpu_custom_call.1} parent=1 // pred_region
      %74 = dma.done [#allocation6], 3072
    $region29: #{tpu_custom_call.1} parent=1 // pred_fallthru
      _
    // Predicated region
    $region30: #{tpu_custom_call.1} parent=1 // pred_check
      _
    $region31: #{tpu_custom_call.1} parent=1 // pred_check_branch
      %76 = sbr.rel (0) target = $region33
    $region32: #{tpu_custom_call.1} parent=1 // pred_region
      %78 = dma.done [#allocation6], 192
    $region33: #{tpu_custom_call.1} parent=1 // pred_fallthru
      _
    // Predicated region
    $region34: #{tpu_custom_call.1} parent=1 // pred_check
      _
    $region35: #{tpu_custom_call.1} parent=1 // pred_check_branch
      %80 = sbr.rel (0) target = $region37
    $region36: #{tpu_custom_call.1} parent=1 // pred_region
      %82 = dma.done [#allocation9], 768
    $region37: #{tpu_custom_call.1} parent=1 // pred_fallthru
      _
    %v83 = vld [vmem:[#allocation2] sm:$0xff]
    %v84 = vld [vmem:[#allocation7] sm:$0xff]
    %v85 = vld [vmem:[#allocation7 + $0x8] sm:$0xf]
    %v86 = vld [vmem:[#allocation5] sm:$0xff]
    %v87 = vld [vmem:[#allocation5 + $0x8] sm:$0xff]
    %v88 = vld [vmem:[#allocation5 + $0x10] sm:$0xff]
    %v89 = vld [vmem:[#allocation5 + $0x18] sm:$0xff]
    %v90 = vld [vmem:[#allocation5 + $0x20] sm:$0xff]
    %v91 = vld [vmem:[#allocation5 + $0x28] sm:$0xff]
    %v92 = vld [vmem:[#allocation5 + $0x30] sm:$0xff]
    %v93 = vld [vmem:[#allocation5 + $0x38] sm:$0xff]
    %v94 = vld [vmem:[#allocation5 + $0x40] sm:$0xff]
    %v95 = vld [vmem:[#allocation5 + $0x48] sm:$0xff]
    %v96 = vld [vmem:[#allocation5 + $0x50] sm:$0xff]
    %v97 = vld [vmem:[#allocation5 + $0x58] sm:$0xff]
    %v98 = vld [vmem:[#allocation5 + $0x60] sm:$0xff]
    %v99 = vld [vmem:[#allocation5 + $0x68] sm:$0xff]
    %v100 = vld [vmem:[#allocation5 + $0x70] sm:$0xff]
    %v101 = vld [vmem:[#allocation5 + $0x78] sm:$0xff]
    %v102 = vld [vmem:[#allocation5 + $0x80] sm:$0xff]
    %v103 = vld [vmem:[#allocation5 + $0x88] sm:$0xff]
    %v104 = vld [vmem:[#allocation5 + $0x90] sm:$0xff]
    %v105 = vld [vmem:[#allocation5 + $0x98] sm:$0xff]
    %v106 = vld [vmem:[#allocation5 + $0xa0] sm:$0xff]
    %v107 = vld [vmem:[#allocation5 + $0xa8] sm:$0xff]
    %v108 = vld [vmem:[#allocation5 + $0xb0] sm:$0xff]
    %v109 = vld [vmem:[#allocation5 + $0xb8] sm:$0xff]
    %vm110 = vcmask 130048
    %v112 = vsel %vm110, %v83, 0
    %114 = vmatpush.msra.mxu0 0.0
    %115 = vmatpush.msra.mxu0 0.0
    %116 = vmatpush.msra.mxu0 0.0
    %117 = vmatpush.msra.mxu0 0.0
    %118 = vmatpush.msra.mxu0 0.0
    %119 = vmatpush.msra.mxu0 0.0
    %120 = vmatpush.msra.mxu0 0.0
    %121 = vmatpush.msra.mxu0 0.0
    %122 = vmatpush.msra.mxu0 0.0
    %123 = vmatpush.msra.mxu0 0.0
    %124 = vmatpush.msra.mxu0 0.0
    %125 = vmatpush.msra.mxu0 0.0
    %126 = vmatpush.msra.mxu0 0.0
    %127 = vmatpush.msra.mxu0 0.0
    %128 = vmatpush.msra.mxu0 %v98
    %129 = vmatpush.msra.mxu0 %v86
    %130 = vmatmul.f32.gmra.mxu0 %v112
    %v131 = vpop.f32.mrf.mxu0
    %v132 = vadd.f32 0.0, %v131
    %133 = vdwg.mxu0
    %134 = vmatpush.msra.mxu0 0.0
    %135 = vmatpush.msra.mxu0 0.0
    %136 = vmatpush.msra.mxu0 0.0
    %137 = vmatpush.msra.mxu0 0.0
    %138 = vmatpush.msra.mxu0 0.0
    %139 = vmatpush.msra.mxu0 0.0
    %140 = vmatpush.msra.mxu0 0.0
    %141 = vmatpush.msra.mxu0 0.0
    %142 = vmatpush.msra.mxu0 0.0
    %143 = vmatpush.msra.mxu0 0.0
    %144 = vmatpush.msra.mxu0 0.0
    %145 = vmatpush.msra.mxu0 0.0
    %146 = vmatpush.msra.mxu0 0.0
    %147 = vmatpush.msra.mxu0 0.0
    %148 = vmatpush.msra.mxu0 %v99
    %149 = vmatpush.msra.mxu0 %v87
    %150 = vmatmul.f32.gmra.mxu0 %v112
    %v151 = vpop.f32.mrf.mxu0
    %v152 = vadd.f32 0.0, %v151
    %153 = vdwg.mxu0
    %154 = vmatpush.msra.mxu0 0.0
    %155 = vmatpush.msra.mxu0 0.0
    %156 = vmatpush.msra.mxu0 0.0
    %157 = vmatpush.msra.mxu0 0.0
    %158 = vmatpush.msra.mxu0 0.0
    %159 = vmatpush.msra.mxu0 0.0
    %160 = vmatpush.msra.mxu0 0.0
    %161 = vmatpush.msra.mxu0 0.0
    %162 = vmatpush.msra.mxu0 0.0
    %163 = vmatpush.msra.mxu0 0.0
    %164 = vmatpush.msra.mxu0 0.0
    %165 = vmatpush.msra.mxu0 0.0
    %166 = vmatpush.msra.mxu0 0.0
    %167 = vmatpush.msra.mxu0 0.0
    %168 = vmatpush.msra.mxu0 %v100
    %169 = vmatpush.msra.mxu0 %v88
    %170 = vmatmul.f32.gmra.mxu0 %v112
    %v171 = vpop.f32.mrf.mxu0
    %v172 = vadd.f32 0.0, %v171
    %173 = vdwg.mxu0
    %174 = vmatpush.msra.mxu0 0.0
    %175 = vmatpush.msra.mxu0 0.0
    %176 = vmatpush.msra.mxu0 0.0
    %177 = vmatpush.msra.mxu0 0.0
    %178 = vmatpush.msra.mxu0 0.0
    %179 = vmatpush.msra.mxu0 0.0
    %180 = vmatpush.msra.mxu0 0.0
    %181 = vmatpush.msra.mxu0 0.0
    %182 = vmatpush.msra.mxu0 0.0
    %183 = vmatpush.msra.mxu0 0.0
    %184 = vmatpush.msra.mxu0 0.0
    %185 = vmatpush.msra.mxu0 0.0
    %186 = vmatpush.msra.mxu0 0.0
    %187 = vmatpush.msra.mxu0 0.0
    %188 = vmatpush.msra.mxu0 %v101
    %189 = vmatpush.msra.mxu0 %v89
    %190 = vmatmul.f32.gmra.mxu0 %v112
    %v191 = vpop.f32.mrf.mxu0
    %v192 = vadd.f32 0.0, %v191
    %193 = vdwg.mxu0
    %194 = vmatpush.msra.mxu0 0.0
    %195 = vmatpush.msra.mxu0 0.0
    %196 = vmatpush.msra.mxu0 0.0
    %197 = vmatpush.msra.mxu0 0.0
    %198 = vmatpush.msra.mxu0 0.0
    %199 = vmatpush.msra.mxu0 0.0
    %200 = vmatpush.msra.mxu0 0.0
    %201 = vmatpush.msra.mxu0 0.0
    %202 = vmatpush.msra.mxu0 0.0
    %203 = vmatpush.msra.mxu0 0.0
    %204 = vmatpush.msra.mxu0 0.0
    %205 = vmatpush.msra.mxu0 0.0
    %206 = vmatpush.msra.mxu0 0.0
    %207 = vmatpush.msra.mxu0 0.0
    %208 = vmatpush.msra.mxu0 %v102
    %209 = vmatpush.msra.mxu0 %v90
    %210 = vmatmul.f32.gmra.mxu0 %v112
    %v211 = vpop.f32.mrf.mxu0
    %v212 = vadd.f32 0.0, %v211
    %213 = vdwg.mxu0
    %214 = vmatpush.msra.mxu0 0.0
    %215 = vmatpush.msra.mxu0 0.0
    %216 = vmatpush.msra.mxu0 0.0
    %217 = vmatpush.msra.mxu0 0.0
    %218 = vmatpush.msra.mxu0 0.0
    %219 = vmatpush.msra.mxu0 0.0
    %220 = vmatpush.msra.mxu0 0.0
    %221 = vmatpush.msra.mxu0 0.0
    %222 = vmatpush.msra.mxu0 0.0
    %223 = vmatpush.msra.mxu0 0.0
    %224 = vmatpush.msra.mxu0 0.0
    %225 = vmatpush.msra.mxu0 0.0
    %226 = vmatpush.msra.mxu0 0.0
    %227 = vmatpush.msra.mxu0 0.0
    %228 = vmatpush.msra.mxu0 %v103
    %229 = vmatpush.msra.mxu0 %v91
    %230 = vmatmul.f32.gmra.mxu0 %v112
    %v231 = vpop.f32.mrf.mxu0
    %v232 = vadd.f32 0.0, %v231
    %233 = vdwg.mxu0
    %234 = vmatpush.msra.mxu0 0.0
    %235 = vmatpush.msra.mxu0 0.0
    %236 = vmatpush.msra.mxu0 0.0
    %237 = vmatpush.msra.mxu0 0.0
    %238 = vmatpush.msra.mxu0 0.0
    %239 = vmatpush.msra.mxu0 0.0
    %240 = vmatpush.msra.mxu0 0.0
    %241 = vmatpush.msra.mxu0 0.0
    %242 = vmatpush.msra.mxu0 0.0
    %243 = vmatpush.msra.mxu0 0.0
    %244 = vmatpush.msra.mxu0 0.0
    %245 = vmatpush.msra.mxu0 0.0
    %246 = vmatpush.msra.mxu0 0.0
    %247 = vmatpush.msra.mxu0 0.0
    %248 = vmatpush.msra.mxu0 %v104
    %249 = vmatpush.msra.mxu0 %v92
    %250 = vmatmul.f32.gmra.mxu0 %v112
    %v251 = vpop.f32.mrf.mxu0
    %v252 = vadd.f32 0.0, %v251
    %253 = vdwg.mxu0
    %254 = vmatpush.msra.mxu0 0.0
    %255 = vmatpush.msra.mxu0 0.0
    %256 = vmatpush.msra.mxu0 0.0
    %257 = vmatpush.msra.mxu0 0.0
    %258 = vmatpush.msra.mxu0 0.0
    %259 = vmatpush.msra.mxu0 0.0
    %260 = vmatpush.msra.mxu0 0.0
    %261 = vmatpush.msra.mxu0 0.0
    %262 = vmatpush.msra.mxu0 0.0
    %263 = vmatpush.msra.mxu0 0.0
    %264 = vmatpush.msra.mxu0 0.0
    %265 = vmatpush.msra.mxu0 0.0
    %266 = vmatpush.msra.mxu0 0.0
    %267 = vmatpush.msra.mxu0 0.0
    %268 = vmatpush.msra.mxu0 %v105
    %269 = vmatpush.msra.mxu0 %v93
    %270 = vmatmul.f32.gmra.mxu0 %v112
    %v271 = vpop.f32.mrf.mxu0
    %v272 = vadd.f32 0.0, %v271
    %273 = vdwg.mxu0
    %274 = vmatpush.msra.mxu0 0.0
    %275 = vmatpush.msra.mxu0 0.0
    %276 = vmatpush.msra.mxu0 0.0
    %277 = vmatpush.msra.mxu0 0.0
    %278 = vmatpush.msra.mxu0 0.0
    %279 = vmatpush.msra.mxu0 0.0
    %280 = vmatpush.msra.mxu0 0.0
    %281 = vmatpush.msra.mxu0 0.0
    %282 = vmatpush.msra.mxu0 0.0
    %283 = vmatpush.msra.mxu0 0.0
    %284 = vmatpush.msra.mxu0 0.0
    %285 = vmatpush.msra.mxu0 0.0
    %286 = vmatpush.msra.mxu0 0.0
    %287 = vmatpush.msra.mxu0 0.0
    %288 = vmatpush.msra.mxu0 %v106
    %289 = vmatpush.msra.mxu0 %v94
    %290 = vmatmul.f32.gmra.mxu0 %v112
    %v291 = vpop.f32.mrf.mxu0
    %v292 = vadd.f32 0.0, %v291
    %293 = vdwg.mxu0
    %294 = vmatpush.msra.mxu0 0.0
    %295 = vmatpush.msra.mxu0 0.0
    %296 = vmatpush.msra.mxu0 0.0
    %297 = vmatpush.msra.mxu0 0.0
    %298 = vmatpush.msra.mxu0 0.0
    %299 = vmatpush.msra.mxu0 0.0
    %300 = vmatpush.msra.mxu0 0.0
    %301 = vmatpush.msra.mxu0 0.0
    %302 = vmatpush.msra.mxu0 0.0
    %303 = vmatpush.msra.mxu0 0.0
    %304 = vmatpush.msra.mxu0 0.0
    %305 = vmatpush.msra.mxu0 0.0
    %306 = vmatpush.msra.mxu0 0.0
    %307 = vmatpush.msra.mxu0 0.0
    %308 = vmatpush.msra.mxu0 %v107
    %309 = vmatpush.msra.mxu0 %v95
    %310 = vmatmul.f32.gmra.mxu0 %v112
    %v311 = vpop.f32.mrf.mxu0
    %v312 = vadd.f32 0.0, %v311
    %313 = vdwg.mxu0
    %314 = vmatpush.msra.mxu0 0.0
    %315 = vmatpush.msra.mxu0 0.0
    %316 = vmatpush.msra.mxu0 0.0
    %317 = vmatpush.msra.mxu0 0.0
    %318 = vmatpush.msra.mxu0 0.0
    %319 = vmatpush.msra.mxu0 0.0
    %320 = vmatpush.msra.mxu0 0.0
    %321 = vmatpush.msra.mxu0 0.0
    %322 = vmatpush.msra.mxu0 0.0
    %323 = vmatpush.msra.mxu0 0.0
    %324 = vmatpush.msra.mxu0 0.0
    %325 = vmatpush.msra.mxu0 0.0
    %326 = vmatpush.msra.mxu0 0.0
    %327 = vmatpush.msra.mxu0 0.0
    %328 = vmatpush.msra.mxu0 %v108
    %329 = vmatpush.msra.mxu0 %v96
    %330 = vmatmul.f32.gmra.mxu0 %v112
    %v331 = vpop.f32.mrf.mxu0
    %v332 = vadd.f32 0.0, %v331
    %333 = vdwg.mxu0
    %334 = vmatpush.msra.mxu0 0.0
    %335 = vmatpush.msra.mxu0 0.0
    %336 = vmatpush.msra.mxu0 0.0
    %337 = vmatpush.msra.mxu0 0.0
    %338 = vmatpush.msra.mxu0 0.0
    %339 = vmatpush.msra.mxu0 0.0
    %340 = vmatpush.msra.mxu0 0.0
    %341 = vmatpush.msra.mxu0 0.0
    %342 = vmatpush.msra.mxu0 0.0
    %343 = vmatpush.msra.mxu0 0.0
    %344 = vmatpush.msra.mxu0 0.0
    %345 = vmatpush.msra.mxu0 0.0
    %346 = vmatpush.msra.mxu0 0.0
    %347 = vmatpush.msra.mxu0 0.0
    %348 = vmatpush.msra.mxu0 %v109
    %349 = vmatpush.msra.mxu0 %v97
    %350 = vmatmul.f32.gmra.mxu0 %v112
    %v351 = vpop.f32.mrf.mxu0
    %v352 = vadd.f32 0.0, %v351
    %353 = vdwg.mxu0
    %v356 = vperm.slane %v84, 0
    %v357 = vperm.slane %v84, 1
    %v358 = vperm.slane %v84, 2
    %v359 = vperm.slane %v84, 3
    %v360 = vperm.slane %v84, 4
    %v361 = vperm.slane %v84, 5
    %v362 = vperm.slane %v84, 6
    %v363 = vperm.slane %v84, 7
    %v364 = vperm.slane %v85, 0
    %v365 = vperm.slane %v85, 1
    %v366 = vperm.slane %v85, 2
    %v367 = vperm.slane %v85, 3
    %v380 = vadd.f32 %v356, %v132
    %v381 = vadd.f32 %v357, %v152
    %v382 = vadd.f32 %v358, %v172
    %v383 = vadd.f32 %v359, %v192
    %v384 = vadd.f32 %v360, %v212
    %v385 = vadd.f32 %v361, %v232
    %v386 = vadd.f32 %v362, %v252
    %v387 = vadd.f32 %v363, %v272
    %v388 = vadd.f32 %v364, %v292
    %v389 = vadd.f32 %v365, %v312
    %v390 = vadd.f32 %v366, %v332
    %v391 = vadd.f32 %v367, %v352
    %v392 = vld [vmem:[%s4] sm:$0x7]
    %v393 = vld [vmem:[#allocation8] sm:$0xff]
    %v394 = vld [vmem:[#allocation8 + $0x8] sm:$0xff]
    %v395 = vld [vmem:[#allocation8 + $0x10] sm:$0xff]
    %v396 = vld [vmem:[#allocation8 + $0x18] sm:$0xff]
    %v397 = vld [vmem:[#allocation8 + $0x20] sm:$0xff]
    %v398 = vld [vmem:[#allocation8 + $0x28] sm:$0xff]
    %399 = vmatpush.msra.mxu0 0.0
    %400 = vmatpush.msra.mxu0 0.0
    %401 = vmatpush.msra.mxu0 0.0
    %402 = vmatpush.msra.mxu0 0.0
    %403 = vmatpush.msra.mxu0 0.0
    %404 = vmatpush.msra.mxu0 0.0
    %405 = vmatpush.msra.mxu0 0.0
    %406 = vmatpush.msra.mxu0 0.0
    %407 = vmatpush.msra.mxu0 0.0
    %408 = vmatpush.msra.mxu0 0.0
    %409 = vmatpush.msra.mxu0 0.0
    %410 = vmatpush.msra.mxu0 0.0
    %411 = vmatpush.msra.mxu0 0.0
    %412 = vmatpush.msra.mxu0 0.0
    %413 = vmatpush.msra.mxu0 %v396
    %414 = vmatpush.msra.mxu0 %v393
    %415 = vmatmul.f32.gmra.mxu0 %v112
    %v416 = vpop.f32.mrf.mxu0
    %v417 = vadd.f32 0.0, %v416
    %418 = vdwg.mxu0
    %419 = vmatpush.msra.mxu0 0.0
    %420 = vmatpush.msra.mxu0 0.0
    %421 = vmatpush.msra.mxu0 0.0
    %422 = vmatpush.msra.mxu0 0.0
    %423 = vmatpush.msra.mxu0 0.0
    %424 = vmatpush.msra.mxu0 0.0
    %425 = vmatpush.msra.mxu0 0.0
    %426 = vmatpush.msra.mxu0 0.0
    %427 = vmatpush.msra.mxu0 0.0
    %428 = vmatpush.msra.mxu0 0.0
    %429 = vmatpush.msra.mxu0 0.0
    %430 = vmatpush.msra.mxu0 0.0
    %431 = vmatpush.msra.mxu0 0.0
    %432 = vmatpush.msra.mxu0 0.0
    %433 = vmatpush.msra.mxu0 %v397
    %434 = vmatpush.msra.mxu0 %v394
    %435 = vmatmul.f32.gmra.mxu0 %v112
    %v436 = vpop.f32.mrf.mxu0
    %v437 = vadd.f32 0.0, %v436
    %438 = vdwg.mxu0
    %439 = vmatpush.msra.mxu0 0.0
    %440 = vmatpush.msra.mxu0 0.0
    %441 = vmatpush.msra.mxu0 0.0
    %442 = vmatpush.msra.mxu0 0.0
    %443 = vmatpush.msra.mxu0 0.0
    %444 = vmatpush.msra.mxu0 0.0
    %445 = vmatpush.msra.mxu0 0.0
    %446 = vmatpush.msra.mxu0 0.0
    %447 = vmatpush.msra.mxu0 0.0
    %448 = vmatpush.msra.mxu0 0.0
    %449 = vmatpush.msra.mxu0 0.0
    %450 = vmatpush.msra.mxu0 0.0
    %451 = vmatpush.msra.mxu0 0.0
    %452 = vmatpush.msra.mxu0 0.0
    %453 = vmatpush.msra.mxu0 %v398
    %454 = vmatpush.msra.mxu0 %v395
    %455 = vmatmul.f32.gmra.mxu0 %v112
    %v456 = vpop.f32.mrf.mxu0
    %v457 = vadd.f32 0.0, %v456
    %458 = vdwg.mxu0
    %v460 = vperm.slane %v392, 0
    %v461 = vperm.slane %v392, 1
    %v462 = vperm.slane %v392, 2
    %v466 = vadd.f32 %v460, %v417
    %v467 = vadd.f32 %v461, %v437
    %v468 = vadd.f32 %v462, %v457
    %470 = vset.pattern.permute.xlu0 0
    %471 = vperm.xlu0 %470, %v466
    %v472 = vpop.permute.xlu0 %471
    %v474 = vsub.f32 %v466, %v472
    %476 = vset.pattern.permute.xlu0 0
    %477 = vperm.xlu0 %476, %v467
    %v478 = vpop.permute.xlu0 %477
    %v480 = vsub.f32 %v467, %v478
    %482 = vset.pattern.permute.xlu0 0
    %483 = vperm.xlu0 %482, %v468
    %v484 = vpop.permute.xlu0 %483
    %v486 = vsub.f32 %v468, %v484
    %487 = vset.pattern.permute.xlu0 19
    %488 = vperm.xlu0 %487, %v83
    %v489 = vpop.permute.xlu0 %488
    %v491 = vmul.f32 %v489, %v474
    %492 = vset.pattern.permute.xlu0 20
    %493 = vperm.xlu0 %492, %v83
    %v494 = vpop.permute.xlu0 %493
    %v496 = vmul.f32 %v494, %v480
    %v497 = vadd.f32 %v491, %v496
    %498 = vset.pattern.permute.xlu0 21
    %499 = vperm.xlu0 %498, %v83
    %v500 = vpop.permute.xlu0 %499
    %v502 = vmul.f32 %v500, %v486
    %v503 = vadd.f32 %v497, %v502
    %v504 = vadd.f32 %v503, %v472
    %505 = vset.pattern.permute.xlu0 16
    %506 = vperm.xlu0 %505, %v83
    %v507 = vpop.permute.xlu0 %506
    %v509 = vadd.f32 %v504, %v507
    %510 = vst [vmem:[#allocation10] sm:$0xff] %v509
    %511 = vset.pattern.permute.xlu0 22
    %512 = vperm.xlu0 %511, %v83
    %v513 = vpop.permute.xlu0 %512
    %v515 = vmul.f32 %v513, %v474
    %516 = vset.pattern.permute.xlu0 23
    %517 = vperm.xlu0 %516, %v83
    %v518 = vpop.permute.xlu0 %517
    %v520 = vmul.f32 %v518, %v480
    %v521 = vadd.f32 %v515, %v520
    %522 = vset.pattern.permute.xlu0 24
    %523 = vperm.xlu0 %522, %v83
    %v524 = vpop.permute.xlu0 %523
    %v526 = vmul.f32 %v524, %v486
    %v527 = vadd.f32 %v521, %v526
    %v528 = vadd.f32 %v527, %v478
    %529 = vset.pattern.permute.xlu0 17
    %530 = vperm.xlu0 %529, %v83
    %v531 = vpop.permute.xlu0 %530
    %v533 = vadd.f32 %v528, %v531
    %534 = vst [vmem:[#allocation10 + $0x8] sm:$0xff] %v533
    %535 = vset.pattern.permute.xlu0 25
    %536 = vperm.xlu0 %535, %v83
    %v537 = vpop.permute.xlu0 %536
    %v539 = vmul.f32 %v537, %v474
    %540 = vset.pattern.permute.xlu0 26
    %541 = vperm.xlu0 %540, %v83
    %v542 = vpop.permute.xlu0 %541
    %v544 = vmul.f32 %v542, %v480
    %v545 = vadd.f32 %v539, %v544
    %546 = vset.pattern.permute.xlu0 27
    %547 = vperm.xlu0 %546, %v83
    %v548 = vpop.permute.xlu0 %547
    %v550 = vmul.f32 %v548, %v486
    %v551 = vadd.f32 %v545, %v550
    %v552 = vadd.f32 %v551, %v484
    %553 = vset.pattern.permute.xlu0 18
    %554 = vperm.xlu0 %553, %v83
    %v555 = vpop.permute.xlu0 %554
    %v557 = vadd.f32 %v552, %v555
    %558 = vst [vmem:[#allocation10 + $0x10] sm:$0xff] %v557
    %v559 = vsub.f32 %v380, %v472
    %v560 = vsub.f32 %v381, %v472
    %v561 = vsub.f32 %v382, %v472
    %v562 = vsub.f32 %v383, %v472
    %v563 = vsub.f32 %v384, %v478
    %v564 = vsub.f32 %v385, %v478
    %v565 = vsub.f32 %v386, %v478
    %v566 = vsub.f32 %v387, %v478
    %v567 = vsub.f32 %v388, %v484
    %v568 = vsub.f32 %v389, %v484
    %v569 = vsub.f32 %v390, %v484
    %v570 = vsub.f32 %v391, %v484
    %v571 = vmul.f32 %v489, %v559
    %v572 = vmul.f32 %v489, %v560
    %v573 = vmul.f32 %v489, %v561
    %v574 = vmul.f32 %v489, %v562
    %v575 = vmul.f32 %v494, %v563
    %v576 = vmul.f32 %v494, %v564
    %v577 = vmul.f32 %v494, %v565
    %v578 = vmul.f32 %v494, %v566
    %v579 = vadd.f32 %v571, %v575
    %v580 = vadd.f32 %v572, %v576
    %v581 = vadd.f32 %v573, %v577
    %v582 = vadd.f32 %v574, %v578
    %v583 = vmul.f32 %v500, %v567
    %v584 = vmul.f32 %v500, %v568
    %v585 = vmul.f32 %v500, %v569
    %v586 = vmul.f32 %v500, %v570
    %v587 = vadd.f32 %v579, %v583
    %v588 = vadd.f32 %v580, %v584
    %v589 = vadd.f32 %v581, %v585
    %v590 = vadd.f32 %v582, %v586
    %v591 = vadd.f32 %v587, %v472
    %v592 = vadd.f32 %v588, %v472
    %v593 = vadd.f32 %v589, %v472
    %v594 = vadd.f32 %v590, %v472
    %v595 = vadd.f32 %v591, %v507
    %v596 = vadd.f32 %v592, %v507
    %v597 = vadd.f32 %v593, %v507
    %v598 = vadd.f32 %v594, %v507
    %599 = vst [vmem:[#allocation11] sm:$0xff] %v595
    %600 = vst [vmem:[#allocation11 + $0x8] sm:$0xff] %v596
    %601 = vst [vmem:[#allocation11 + $0x10] sm:$0xff] %v597
    %602 = vst [vmem:[#allocation11 + $0x18] sm:$0xff] %v598
    %v603 = vmul.f32 %v513, %v559
    %v604 = vmul.f32 %v513, %v560
    %v605 = vmul.f32 %v513, %v561
    %v606 = vmul.f32 %v513, %v562
    %v607 = vmul.f32 %v518, %v563
    %v608 = vmul.f32 %v518, %v564
    %v609 = vmul.f32 %v518, %v565
    %v610 = vmul.f32 %v518, %v566
    %v611 = vadd.f32 %v603, %v607
    %v612 = vadd.f32 %v604, %v608
    %v613 = vadd.f32 %v605, %v609
    %v614 = vadd.f32 %v606, %v610
    %v615 = vmul.f32 %v524, %v567
    %v616 = vmul.f32 %v524, %v568
    %v617 = vmul.f32 %v524, %v569
    %v618 = vmul.f32 %v524, %v570
    %v619 = vadd.f32 %v611, %v615
    %v620 = vadd.f32 %v612, %v616
    %v621 = vadd.f32 %v613, %v617
    %v622 = vadd.f32 %v614, %v618
    %v623 = vadd.f32 %v619, %v478
    %v624 = vadd.f32 %v620, %v478
    %v625 = vadd.f32 %v621, %v478
    %v626 = vadd.f32 %v622, %v478
    %v627 = vadd.f32 %v623, %v531
    %v628 = vadd.f32 %v624, %v531
    %v629 = vadd.f32 %v625, %v531
    %v630 = vadd.f32 %v626, %v531
    %631 = vst [vmem:[#allocation11 + $0x20] sm:$0xff] %v627
    %632 = vst [vmem:[#allocation11 + $0x28] sm:$0xff] %v628
    %633 = vst [vmem:[#allocation11 + $0x30] sm:$0xff] %v629
    %634 = vst [vmem:[#allocation11 + $0x38] sm:$0xff] %v630
    %v635 = vmul.f32 %v537, %v559
    %v636 = vmul.f32 %v537, %v560
    %v637 = vmul.f32 %v537, %v561
    %v638 = vmul.f32 %v537, %v562
    %v639 = vmul.f32 %v542, %v563
    %v640 = vmul.f32 %v542, %v564
    %v641 = vmul.f32 %v542, %v565
    %v642 = vmul.f32 %v542, %v566
    %v643 = vadd.f32 %v635, %v639
    %v644 = vadd.f32 %v636, %v640
    %v645 = vadd.f32 %v637, %v641
    %v646 = vadd.f32 %v638, %v642
    %v647 = vmul.f32 %v548, %v567
    %v648 = vmul.f32 %v548, %v568
    %v649 = vmul.f32 %v548, %v569
    %v650 = vmul.f32 %v548, %v570
    %v651 = vadd.f32 %v643, %v647
    %v652 = vadd.f32 %v644, %v648
    %v653 = vadd.f32 %v645, %v649
    %v654 = vadd.f32 %v646, %v650
    %v655 = vadd.f32 %v651, %v484
    %v656 = vadd.f32 %v652, %v484
    %v657 = vadd.f32 %v653, %v484
    %v658 = vadd.f32 %v654, %v484
    %v659 = vadd.f32 %v655, %v555
    %v660 = vadd.f32 %v656, %v555
    %v661 = vadd.f32 %v657, %v555
    %v662 = vadd.f32 %v658, %v555
    %663 = vst [vmem:[#allocation11 + $0x40] sm:$0xff] %v659
    %664 = vst [vmem:[#allocation11 + $0x48] sm:$0xff] %v660
    %665 = vst [vmem:[#allocation11 + $0x50] sm:$0xff] %v661
    %666 = vst [vmem:[#allocation11 + $0x58] sm:$0xff] %v662
    // Predicated region
    $region38: #{tpu_custom_call.1} parent=1 // pred_check
      _
    $region39: #{tpu_custom_call.1} parent=1 // pred_check_branch
      %668 = sbr.rel (0) target = $region41
    $region40: #{tpu_custom_call.1} parent=1 // pred_region
      %670 = vsyncadd [#allocation4], 0
      %s672 = sshll.u32 [#allocation10], 4
      %s673 = int_to_ptr.vmem [resolvable:$true] %s672
      %s674 = sshll.u32 %s5, 4
      %s675 = int_to_ptr.hbm [resolvable:$true] %s674
      %677 = dma.vmem_to_hbm [thread:$0]  %s673, 384, %s675, [#allocation4]
    $region41: #{tpu_custom_call.1} parent=1 // pred_fallthru
      _
    // Predicated region
    $region42: #{tpu_custom_call.1} parent=1 // pred_check
      _
    $region43: #{tpu_custom_call.1} parent=1 // pred_check_branch
      %679 = sbr.rel (0) target = $region45
    $region44: #{tpu_custom_call.1} parent=1 // pred_region
      %681 = vsyncadd [#allocation12], 0
      %s683 = sshll.u32 [#allocation11], 4
      %s684 = int_to_ptr.vmem [resolvable:$true] %s683
      %s685 = sshll.u32 %s6, 4
      %s686 = int_to_ptr.hbm [resolvable:$true] %s685
      %688 = dma.vmem_to_hbm [thread:$0]  %s684, 1536, %s686, [#allocation12]
    $region45: #{tpu_custom_call.1} parent=1 // pred_fallthru
      _
    // Predicated region
    $region46: #{tpu_custom_call.1} parent=1 // pred_check
      _
    $region47: #{tpu_custom_call.1} parent=1 // pred_check_branch
      %690 = sbr.rel (0) target = $region49
    $region48: #{tpu_custom_call.1} parent=1 // pred_region
      %692 = dma.done [#allocation4], 384
    $region49: #{tpu_custom_call.1} parent=1 // pred_fallthru
      _
    // Predicated region
    $region50: #{tpu_custom_call.1} parent=1 // pred_check
      _
    $region51: #{tpu_custom_call.1} parent=1 // pred_check_branch
      %694 = sbr.rel (0) target = $region53
    $region52: #{tpu_custom_call.1} parent=1 // pred_region
      %696 = dma.done [#allocation12], 1536
    $region53: #{tpu_custom_call.1} parent=1 // pred_fallthru
      _
    %697 = vsyncpa [#allocation3], 1
    %698 = vsyncpa [#allocation6], 1
    %699 = vsyncpa [#allocation9], 1
    %700 = vsyncpa [#allocation4], 1
    %701 = vsyncpa [#allocation12], 1

</llo_original>
